<compile_context>
chip_gen: v7x
topology: tpu7x:2x2x1
jax: 0.10.0
libtpu: 0.0.40
codegen_flags: <defaults>
</compile_context>

<pallas_src>
import functools

import jax
import jax.numpy as jnp
from jax.experimental import pallas as pl
from jax.experimental.pallas import tpu as pltpu


# ----------------------------------------------------------------------------
# Kernel 1: forward() -- dense in-VMEM gather (tables resident, single step)
# ----------------------------------------------------------------------------
def _gather_kernel(u_idx_ref, p_idx_ref, n_idx_ref,   # SMEM (B,) int32
                   u_tbl_ref, i_tbl_ref,              # VMEM (rows, 1, D)
                   u_out_ref, p_out_ref, n_out_ref):  # VMEM (B, D)
    batch = u_out_ref.shape[0]
    # Static (unrolled) loop: batch is a small trace-time constant.
    for b in range(batch):
        u_out_ref[b:b + 1, :] = u_tbl_ref[u_idx_ref[b]]   # (1, D) exact row copy
        p_out_ref[b:b + 1, :] = i_tbl_ref[p_idx_ref[b]]
        n_out_ref[b:b + 1, :] = i_tbl_ref[n_idx_ref[b]]


def bprmf_forward(user_emb_tbl, item_emb_tbl, user_idx, pos_idx, neg_idx):
    """Returns (user_emb, pos_emb, neg_emb), each [B, D]."""
    B = user_idx.shape[0]
    n_users, D = user_emb_tbl.shape
    n_items = item_emb_tbl.shape[0]
    dtype = user_emb_tbl.dtype

    vmem = pl.BlockSpec(memory_space=pltpu.MemorySpace.VMEM)
    smem = pl.BlockSpec(memory_space=pltpu.MemorySpace.SMEM)
    out = jax.ShapeDtypeStruct((B, D), dtype)

    return pl.pallas_call(
        _gather_kernel,
        in_specs=[smem, smem, smem, vmem, vmem],
        out_specs=(vmem, vmem, vmem),
        out_shape=(out, out, out),
    )(user_idx.astype(jnp.int32), pos_idx.astype(jnp.int32),
      neg_idx.astype(jnp.int32),
      user_emb_tbl.reshape(n_users, 1, D),
      item_emb_tbl.reshape(n_items, 1, D))


# ----------------------------------------------------------------------------
# Shared loss math (traced inside kernels; all constants folded at trace time)
# ----------------------------------------------------------------------------
def _bpr_loss_math(u, p, n, emb_scale):
    pos_scores = jnp.sum(u * p, axis=1, keepdims=True)   # (B, 1)
    neg_scores = jnp.sum(u * n, axis=1, keepdims=True)   # (B, 1)
    x = pos_scores - neg_scores
    # numerically stable log-sigmoid: min(x, 0) - log1p(exp(-|x|))  (EUP work)
    logsig = jnp.minimum(x, 0.0) - jnp.log1p(jnp.exp(-jnp.abs(x)))
    mf_loss = -1.0 * jnp.mean(logsig)
    regularizer = 0.5 * (jnp.sum(u * u) + jnp.sum(p * p) + jnp.sum(n * n))
    emb_loss = emb_scale * regularizer          # emb_scale = decay / batch_size
    return mf_loss + emb_loss, mf_loss, emb_loss


# ----------------------------------------------------------------------------
# Kernel 2: bpr_loss() on pre-gathered embeddings (module API parity)
# ----------------------------------------------------------------------------
def _bpr_loss_kernel(u_ref, p_ref, n_ref, loss_ref, mf_ref, emb_ref, *, emb_scale):
    loss, mf, emb = _bpr_loss_math(u_ref[...].astype(jnp.float32),
                                   p_ref[...].astype(jnp.float32),
                                   n_ref[...].astype(jnp.float32),
                                   emb_scale)
    loss_ref[0, 0] = loss
    mf_ref[0, 0] = mf
    emb_ref[0, 0] = emb


def bprmf_bpr_loss(user_emb, pos_emb, neg_emb, *, decay, batch_size):
    kernel = functools.partial(_bpr_loss_kernel,
                               emb_scale=float(decay) / float(batch_size))
    scalar = jax.ShapeDtypeStruct((1, 1), jnp.float32)
    vmem = pl.BlockSpec(memory_space=pltpu.MemorySpace.VMEM)
    smem = pl.BlockSpec(memory_space=pltpu.MemorySpace.SMEM)
    loss, mf_loss, emb_loss = pl.pallas_call(
        kernel,
        in_specs=[vmem, vmem, vmem],
        out_specs=(smem, smem, smem),
        out_shape=(scalar, scalar, scalar),
    )(user_emb, pos_emb, neg_emb)
    return loss[0, 0], mf_loss[0, 0], emb_loss[0, 0]


# ----------------------------------------------------------------------------
# Kernel 3: fused gather + bpr_loss (single pallas_call, no HBM round trip)
# ----------------------------------------------------------------------------
def _fused_loss_kernel(u_idx_ref, p_idx_ref, n_idx_ref,   # SMEM (B,) int32
                       u_tbl_ref, i_tbl_ref,              # VMEM (rows, 1, D)
                       loss_ref, mf_ref, emb_ref,         # SMEM (1, 1)
                       u_sc, p_sc, n_sc,                  # VMEM (B, D) scratch
                       *, emb_scale):
    batch = u_sc.shape[0]
    for b in range(batch):
        u_sc[b:b + 1, :] = u_tbl_ref[u_idx_ref[b]]
        p_sc[b:b + 1, :] = i_tbl_ref[p_idx_ref[b]]
        n_sc[b:b + 1, :] = i_tbl_ref[n_idx_ref[b]]
    loss, mf, emb = _bpr_loss_math(u_sc[...].astype(jnp.float32),
                                   p_sc[...].astype(jnp.float32),
                                   n_sc[...].astype(jnp.float32),
                                   emb_scale)
    loss_ref[0, 0] = loss
    mf_ref[0, 0] = mf
    emb_ref[0, 0] = emb


def bprmf_loss_fused(user_emb_tbl, item_emb_tbl, user_idx, pos_idx, neg_idx,
                     *, decay, batch_size):
    B = user_idx.shape[0]
    n_users, D = user_emb_tbl.shape
    n_items = item_emb_tbl.shape[0]
    dtype = user_emb_tbl.dtype

    kernel = functools.partial(_fused_loss_kernel,
                               emb_scale=float(decay) / float(batch_size))
    scalar = jax.ShapeDtypeStruct((1, 1), jnp.float32)
    vmem = pl.BlockSpec(memory_space=pltpu.MemorySpace.VMEM)
    smem = pl.BlockSpec(memory_space=pltpu.MemorySpace.SMEM)

    loss, mf_loss, emb_loss = pl.pallas_call(
        kernel,
        in_specs=[smem, smem, smem, vmem, vmem],
        out_specs=(smem, smem, smem),
        out_shape=(scalar, scalar, scalar),
        scratch_shapes=[pltpu.VMEM((B, D), dtype),
                        pltpu.VMEM((B, D), dtype),
                        pltpu.VMEM((B, D), dtype)],
    )(user_idx.astype(jnp.int32), pos_idx.astype(jnp.int32),
      neg_idx.astype(jnp.int32),
      user_emb_tbl.reshape(n_users, 1, D),
      item_emb_tbl.reshape(n_items, 1, D))
    return loss[0, 0], mf_loss[0, 0], emb_loss[0, 0]


# ----------------------------------------------------------------------------
# Reference (plain JAX) for validation
# ----------------------------------------------------------------------------
def _ref_forward(u_tbl, i_tbl, u, p, n):
    return u_tbl[u, :], i_tbl[p, :], i_tbl[n, :]


def _ref_bpr_loss(ue, pe, ne, decay, batch_size):
    pos = jnp.sum(ue * pe, axis=1)
    neg = jnp.sum(ue * ne, axis=1)
    mf = -jnp.mean(jax.nn.log_sigmoid(pos - neg))
    reg = 0.5 * (jnp.sum(ue ** 2) + jnp.sum(pe ** 2) + jnp.sum(ne ** 2))
    emb = decay * reg / batch_size
    return mf + emb, mf, emb


if __name__ == "__main__":
    # Model config (small, deterministic)
    n_users, n_items, n_factors = 64, 96, 128
    decay, batch_size = 1e-3, 8
    B = batch_size

    key = jax.random.PRNGKey(0)
    k_u, k_i, k_bu, k_bp, k_bn = jax.random.split(key, 5)

    # nn.init.normal_(std=0.01) equivalent
    user_emb_tbl = (0.01 * jax.random.normal(k_u, (n_users, n_factors))
                    ).astype(jnp.float32)
    item_emb_tbl = (0.01 * jax.random.normal(k_i, (n_items, n_factors))
                    ).astype(jnp.float32)

    user_idx = jax.random.randint(k_bu, (B,), 0, n_users, dtype=jnp.int32)
    pos_idx = jax.random.randint(k_bp, (B,), 0, n_items, dtype=jnp.int32)
    neg_idx = jax.random.randint(k_bn, (B,), 0, n_items, dtype=jnp.int32)

    # forward: (user_emb, pos_emb, neg_emb)
    u_e, p_e, n_e = jax.block_until_ready(
        bprmf_forward(user_emb_tbl, item_emb_tbl, user_idx, pos_idx, neg_idx))

    # bpr_loss on the gathered embeddings (module API parity)
    loss, mf_loss, emb_loss = jax.block_until_ready(
        bprmf_bpr_loss(u_e, p_e, n_e, decay=decay, batch_size=batch_size))

    # fused gather + loss (optimized training path)
    floss, fmf, femb = jax.block_until_ready(
        bprmf_loss_fused(user_emb_tbl, item_emb_tbl, user_idx, pos_idx, neg_idx,
                         decay=decay, batch_size=batch_size))

    # validate against plain-JAX reference
    ru, rp, rn = _ref_forward(user_emb_tbl, item_emb_tbl,
                              user_idx, pos_idx, neg_idx)
    rloss, rmf, remb = _ref_bpr_loss(ru, rp, rn, decay, batch_size)

    assert jnp.array_equal(u_e, ru) and jnp.array_equal(p_e, rp) and jnp.array_equal(n_e, rn)
    assert jnp.allclose(loss, rloss, atol=1e-6)
    assert jnp.allclose(mf_loss, rmf, atol=1e-6)
    assert jnp.allclose(emb_loss, remb, atol=1e-6)
    assert jnp.allclose(floss, rloss, atol=1e-6)
    assert jnp.allclose(fmf, rmf, atol=1e-6)
    assert jnp.allclose(femb, remb, atol=1e-6)

    print("KERNEL_OK")
</pallas_src>

<mosaic_0001>
module attributes {stable_mosaic.version = 11 : i64} {
  func.func @_gather_kernel(%arg0: memref<8xi32, #tpu.memory_space<smem>>, %arg1: memref<8xi32, #tpu.memory_space<smem>>, %arg2: memref<8xi32, #tpu.memory_space<smem>>, %arg3: memref<64x1x128xf32, #tpu.memory_space<vmem>>, %arg4: memref<96x1x128xf32, #tpu.memory_space<vmem>>, %arg5: memref<8x128xf32, #tpu.memory_space<vmem>>, %arg6: memref<8x128xf32, #tpu.memory_space<vmem>>, %arg7: memref<8x128xf32, #tpu.memory_space<vmem>>) attributes {dimension_semantics = [], scalar_prefetch = 0 : i64, scratch_operands = 0 : i64, tpu.core_type = #tpu.core_type<tc>} {
    %c0 = arith.constant 0 : index
    %0 = memref.load %arg0[%c0] : memref<8xi32, #tpu.memory_space<smem>>
    %1 = arith.index_cast %0 : i32 to index
    %c0_0 = arith.constant 0 : index
    %c0_1 = arith.constant 0 : index
    %2 = vector.load %arg3[%1, %c0_0, %c0_1] : memref<64x1x128xf32, #tpu.memory_space<vmem>>, vector<1x1x128xf32>
    %3 = vector.shape_cast %2 : vector<1x1x128xf32> to vector<1x128xf32>
    %c0_2 = arith.constant 0 : index
    %c0_3 = arith.constant 0 : index
    %4 = vector.load %arg5[%c0_2, %c0_3] : memref<8x128xf32, #tpu.memory_space<vmem>>, vector<1x128xf32>
    tpu.vector_store %arg5[%c0_2, %c0_3], %3 {strides = array<i32>} : memref<8x128xf32, #tpu.memory_space<vmem>>, vector<1x128xf32>,
    %c0_4 = arith.constant 0 : index
    %5 = memref.load %arg1[%c0_4] : memref<8xi32, #tpu.memory_space<smem>>
    %6 = arith.index_cast %5 : i32 to index
    %c0_5 = arith.constant 0 : index
    %c0_6 = arith.constant 0 : index
    %7 = vector.load %arg4[%6, %c0_5, %c0_6] : memref<96x1x128xf32, #tpu.memory_space<vmem>>, vector<1x1x128xf32>
    %8 = vector.shape_cast %7 : vector<1x1x128xf32> to vector<1x128xf32>
    %c0_7 = arith.constant 0 : index
    %c0_8 = arith.constant 0 : index
    %9 = vector.load %arg6[%c0_7, %c0_8] : memref<8x128xf32, #tpu.memory_space<vmem>>, vector<1x128xf32>
    tpu.vector_store %arg6[%c0_7, %c0_8], %8 {strides = array<i32>} : memref<8x128xf32, #tpu.memory_space<vmem>>, vector<1x128xf32>,
    %c0_9 = arith.constant 0 : index
    %10 = memref.load %arg2[%c0_9] : memref<8xi32, #tpu.memory_space<smem>>
    %11 = arith.index_cast %10 : i32 to index
    %c0_10 = arith.constant 0 : index
    %c0_11 = arith.constant 0 : index
    %12 = vector.load %arg4[%11, %c0_10, %c0_11] : memref<96x1x128xf32, #tpu.memory_space<vmem>>, vector<1x1x128xf32>
    %13 = vector.shape_cast %12 : vector<1x1x128xf32> to vector<1x128xf32>
    %c0_12 = arith.constant 0 : index
    %c0_13 = arith.constant 0 : index
    %14 = vector.load %arg7[%c0_12, %c0_13] : memref<8x128xf32, #tpu.memory_space<vmem>>, vector<1x128xf32>
    tpu.vector_store %arg7[%c0_12, %c0_13], %13 {strides = array<i32>} : memref<8x128xf32, #tpu.memory_space<vmem>>, vector<1x128xf32>,
    %c1 = arith.constant 1 : index
    %15 = memref.load %arg0[%c1] : memref<8xi32, #tpu.memory_space<smem>>
    %16 = arith.index_cast %15 : i32 to index
    %c0_14 = arith.constant 0 : index
    %c0_15 = arith.constant 0 : index
    %17 = vector.load %arg3[%16, %c0_14, %c0_15] : memref<64x1x128xf32, #tpu.memory_space<vmem>>, vector<1x1x128xf32>
    %18 = vector.shape_cast %17 : vector<1x1x128xf32> to vector<1x128xf32>
    %c1_16 = arith.constant 1 : index
    %c0_17 = arith.constant 0 : index
    %19 = vector.load %arg5[%c1_16, %c0_17] : memref<8x128xf32, #tpu.memory_space<vmem>>, vector<1x128xf32>
    tpu.vector_store %arg5[%c1_16, %c0_17], %18 {strides = array<i32>} : memref<8x128xf32, #tpu.memory_space<vmem>>, vector<1x128xf32>,
    %c1_18 = arith.constant 1 : index
    %20 = memref.load %arg1[%c1_18] : memref<8xi32, #tpu.memory_space<smem>>
    %21 = arith.index_cast %20 : i32 to index
    %c0_19 = arith.constant 0 : index
    %c0_20 = arith.constant 0 : index
    %22 = vector.load %arg4[%21, %c0_19, %c0_20] : memref<96x1x128xf32, #tpu.memory_space<vmem>>, vector<1x1x128xf32>
    %23 = vector.shape_cast %22 : vector<1x1x128xf32> to vector<1x128xf32>
    %c1_21 = arith.constant 1 : index
    %c0_22 = arith.constant 0 : index
    %24 = vector.load %arg6[%c1_21, %c0_22] : memref<8x128xf32, #tpu.memory_space<vmem>>, vector<1x128xf32>
    tpu.vector_store %arg6[%c1_21, %c0_22], %23 {strides = array<i32>} : memref<8x128xf32, #tpu.memory_space<vmem>>, vector<1x128xf32>,
    %c1_23 = arith.constant 1 : index
    %25 = memref.load %arg2[%c1_23] : memref<8xi32, #tpu.memory_space<smem>>
    %26 = arith.index_cast %25 : i32 to index
    %c0_24 = arith.constant 0 : index
    %c0_25 = arith.constant 0 : index
    %27 = vector.load %arg4[%26, %c0_24, %c0_25] : memref<96x1x128xf32, #tpu.memory_space<vmem>>, vector<1x1x128xf32>
    %28 = vector.shape_cast %27 : vector<1x1x128xf32> to vector<1x128xf32>
    %c1_26 = arith.constant 1 : index
    %c0_27 = arith.constant 0 : index
    %29 = vector.load %arg7[%c1_26, %c0_27] : memref<8x128xf32, #tpu.memory_space<vmem>>, vector<1x128xf32>
    tpu.vector_store %arg7[%c1_26, %c0_27], %28 {strides = array<i32>} : memref<8x128xf32, #tpu.memory_space<vmem>>, vector<1x128xf32>,
    %c2 = arith.constant 2 : index
    %30 = memref.load %arg0[%c2] : memref<8xi32, #tpu.memory_space<smem>>
    %31 = arith.index_cast %30 : i32 to index
    %c0_28 = arith.constant 0 : index
    %c0_29 = arith.constant 0 : index
    %32 = vector.load %arg3[%31, %c0_28, %c0_29] : memref<64x1x128xf32, #tpu.memory_space<vmem>>, vector<1x1x128xf32>
    %33 = vector.shape_cast %32 : vector<1x1x128xf32> to vector<1x128xf32>
    %c2_30 = arith.constant 2 : index
    %c0_31 = arith.constant 0 : index
    %34 = vector.load %arg5[%c2_30, %c0_31] : memref<8x128xf32, #tpu.memory_space<vmem>>, vector<1x128xf32>
    tpu.vector_store %arg5[%c2_30, %c0_31], %33 {strides = array<i32>} : memref<8x128xf32, #tpu.memory_space<vmem>>, vector<1x128xf32>,
    %c2_32 = arith.constant 2 : index
    %35 = memref.load %arg1[%c2_32] : memref<8xi32, #tpu.memory_space<smem>>
    %36 = arith.index_cast %35 : i32 to index
    %c0_33 = arith.constant 0 : index
    %c0_34 = arith.constant 0 : index
    %37 = vector.load %arg4[%36, %c0_33, %c0_34] : memref<96x1x128xf32, #tpu.memory_space<vmem>>, vector<1x1x128xf32>
    %38 = vector.shape_cast %37 : vector<1x1x128xf32> to vector<1x128xf32>
    %c2_35 = arith.constant 2 : index
    %c0_36 = arith.constant 0 : index
    %39 = vector.load %arg6[%c2_35, %c0_36] : memref<8x128xf32, #tpu.memory_space<vmem>>, vector<1x128xf32>
    tpu.vector_store %arg6[%c2_35, %c0_36], %38 {strides = array<i32>} : memref<8x128xf32, #tpu.memory_space<vmem>>, vector<1x128xf32>,
    %c2_37 = arith.constant 2 : index
    %40 = memref.load %arg2[%c2_37] : memref<8xi32, #tpu.memory_space<smem>>
    %41 = arith.index_cast %40 : i32 to index
    %c0_38 = arith.constant 0 : index
    %c0_39 = arith.constant 0 : index
    %42 = vector.load %arg4[%41, %c0_38, %c0_39] : memref<96x1x128xf32, #tpu.memory_space<vmem>>, vector<1x1x128xf32>
    %43 = vector.shape_cast %42 : vector<1x1x128xf32> to vector<1x128xf32>
    %c2_40 = arith.constant 2 : index
    %c0_41 = arith.constant 0 : index
    %44 = vector.load %arg7[%c2_40, %c0_41] : memref<8x128xf32, #tpu.memory_space<vmem>>, vector<1x128xf32>
    tpu.vector_store %arg7[%c2_40, %c0_41], %43 {strides = array<i32>} : memref<8x128xf32, #tpu.memory_space<vmem>>, vector<1x128xf32>,
    %c3 = arith.constant 3 : index
    %45 = memref.load %arg0[%c3] : memref<8xi32, #tpu.memory_space<smem>>
    %46 = arith.index_cast %45 : i32 to index
    %c0_42 = arith.constant 0 : index
    %c0_43 = arith.constant 0 : index
    %47 = vector.load %arg3[%46, %c0_42, %c0_43] : memref<64x1x128xf32, #tpu.memory_space<vmem>>, vector<1x1x128xf32>
    %48 = vector.shape_cast %47 : vector<1x1x128xf32> to vector<1x128xf32>
    %c3_44 = arith.constant 3 : index
    %c0_45 = arith.constant 0 : index
    %49 = vector.load %arg5[%c3_44, %c0_45] : memref<8x128xf32, #tpu.memory_space<vmem>>, vector<1x128xf32>
    tpu.vector_store %arg5[%c3_44, %c0_45], %48 {strides = array<i32>} : memref<8x128xf32, #tpu.memory_space<vmem>>, vector<1x128xf32>,
    %c3_46 = arith.constant 3 : index
    %50 = memref.load %arg1[%c3_46] : memref<8xi32, #tpu.memory_space<smem>>
    %51 = arith.index_cast %50 : i32 to index
    %c0_47 = arith.constant 0 : index
    %c0_48 = arith.constant 0 : index
    %52 = vector.load %arg4[%51, %c0_47, %c0_48] : memref<96x1x128xf32, #tpu.memory_space<vmem>>, vector<1x1x128xf32>
    %53 = vector.shape_cast %52 : vector<1x1x128xf32> to vector<1x128xf32>
    %c3_49 = arith.constant 3 : index
    %c0_50 = arith.constant 0 : index
    %54 = vector.load %arg6[%c3_49, %c0_50] : memref<8x128xf32, #tpu.memory_space<vmem>>, vector<1x128xf32>
    tpu.vector_store %arg6[%c3_49, %c0_50], %53 {strides = array<i32>} : memref<8x128xf32, #tpu.memory_space<vmem>>, vector<1x128xf32>,
    %c3_51 = arith.constant 3 : index
    %55 = memref.load %arg2[%c3_51] : memref<8xi32, #tpu.memory_space<smem>>
    %56 = arith.index_cast %55 : i32 to index
    %c0_52 = arith.constant 0 : index
    %c0_53 = arith.constant 0 : index
    %57 = vector.load %arg4[%56, %c0_52, %c0_53] : memref<96x1x128xf32, #tpu.memory_space<vmem>>, vector<1x1x128xf32>
    %58 = vector.shape_cast %57 : vector<1x1x128xf32> to vector<1x128xf32>
    %c3_54 = arith.constant 3 : index
    %c0_55 = arith.constant 0 : index
    %59 = vector.load %arg7[%c3_54, %c0_55] : memref<8x128xf32, #tpu.memory_space<vmem>>, vector<1x128xf32>
    tpu.vector_store %arg7[%c3_54, %c0_55], %58 {strides = array<i32>} : memref<8x128xf32, #tpu.memory_space<vmem>>, vector<1x128xf32>,
    %c4 = arith.constant 4 : index
    %60 = memref.load %arg0[%c4] : memref<8xi32, #tpu.memory_space<smem>>
    %61 = arith.index_cast %60 : i32 to index
    %c0_56 = arith.constant 0 : index
    %c0_57 = arith.constant 0 : index
    %62 = vector.load %arg3[%61, %c0_56, %c0_57] : memref<64x1x128xf32, #tpu.memory_space<vmem>>, vector<1x1x128xf32>
    %63 = vector.shape_cast %62 : vector<1x1x128xf32> to vector<1x128xf32>
    %c4_58 = arith.constant 4 : index
    %c0_59 = arith.constant 0 : index
    %64 = vector.load %arg5[%c4_58, %c0_59] : memref<8x128xf32, #tpu.memory_space<vmem>>, vector<1x128xf32>
    tpu.vector_store %arg5[%c4_58, %c0_59], %63 {strides = array<i32>} : memref<8x128xf32, #tpu.memory_space<vmem>>, vector<1x128xf32>,
    %c4_60 = arith.constant 4 : index
    %65 = memref.load %arg1[%c4_60] : memref<8xi32, #tpu.memory_space<smem>>
    %66 = arith.index_cast %65 : i32 to index
    %c0_61 = arith.constant 0 : index
    %c0_62 = arith.constant 0 : index
    %67 = vector.load %arg4[%66, %c0_61, %c0_62] : memref<96x1x128xf32, #tpu.memory_space<vmem>>, vector<1x1x128xf32>
    %68 = vector.shape_cast %67 : vector<1x1x128xf32> to vector<1x128xf32>
    %c4_63 = arith.constant 4 : index
    %c0_64 = arith.constant 0 : index
    %69 = vector.load %arg6[%c4_63, %c0_64] : memref<8x128xf32, #tpu.memory_space<vmem>>, vector<1x128xf32>
    tpu.vector_store %arg6[%c4_63, %c0_64], %68 {strides = array<i32>} : memref<8x128xf32, #tpu.memory_space<vmem>>, vector<1x128xf32>,
    %c4_65 = arith.constant 4 : index
    %70 = memref.load %arg2[%c4_65] : memref<8xi32, #tpu.memory_space<smem>>
    %71 = arith.index_cast %70 : i32 to index
    %c0_66 = arith.constant 0 : index
    %c0_67 = arith.constant 0 : index
    %72 = vector.load %arg4[%71, %c0_66, %c0_67] : memref<96x1x128xf32, #tpu.memory_space<vmem>>, vector<1x1x128xf32>
    %73 = vector.shape_cast %72 : vector<1x1x128xf32> to vector<1x128xf32>
    %c4_68 = arith.constant 4 : index
    %c0_69 = arith.constant 0 : index
    %74 = vector.load %arg7[%c4_68, %c0_69] : memref<8x128xf32, #tpu.memory_space<vmem>>, vector<1x128xf32>
    tpu.vector_store %arg7[%c4_68, %c0_69], %73 {strides = array<i32>} : memref<8x128xf32, #tpu.memory_space<vmem>>, vector<1x128xf32>,
    %c5 = arith.constant 5 : index
    %75 = memref.load %arg0[%c5] : memref<8xi32, #tpu.memory_space<smem>>
    %76 = arith.index_cast %75 : i32 to index
    %c0_70 = arith.constant 0 : index
    %c0_71 = arith.constant 0 : index
    %77 = vector.load %arg3[%76, %c0_70, %c0_71] : memref<64x1x128xf32, #tpu.memory_space<vmem>>, vector<1x1x128xf32>
    %78 = vector.shape_cast %77 : vector<1x1x128xf32> to vector<1x128xf32>
    %c5_72 = arith.constant 5 : index
    %c0_73 = arith.constant 0 : index
    %79 = vector.load %arg5[%c5_72, %c0_73] : memref<8x128xf32, #tpu.memory_space<vmem>>, vector<1x128xf32>
    tpu.vector_store %arg5[%c5_72, %c0_73], %78 {strides = array<i32>} : memref<8x128xf32, #tpu.memory_space<vmem>>, vector<1x128xf32>,
    %c5_74 = arith.constant 5 : index
    %80 = memref.load %arg1[%c5_74] : memref<8xi32, #tpu.memory_space<smem>>
    %81 = arith.index_cast %80 : i32 to index
    %c0_75 = arith.constant 0 : index
    %c0_76 = arith.constant 0 : index
    %82 = vector.load %arg4[%81, %c0_75, %c0_76] : memref<96x1x128xf32, #tpu.memory_space<vmem>>, vector<1x1x128xf32>
    %83 = vector.shape_cast %82 : vector<1x1x128xf32> to vector<1x128xf32>
    %c5_77 = arith.constant 5 : index
    %c0_78 = arith.constant 0 : index
    %84 = vector.load %arg6[%c5_77, %c0_78] : memref<8x128xf32, #tpu.memory_space<vmem>>, vector<1x128xf32>
    tpu.vector_store %arg6[%c5_77, %c0_78], %83 {strides = array<i32>} : memref<8x128xf32, #tpu.memory_space<vmem>>, vector<1x128xf32>,
    %c5_79 = arith.constant 5 : index
    %85 = memref.load %arg2[%c5_79] : memref<8xi32, #tpu.memory_space<smem>>
    %86 = arith.index_cast %85 : i32 to index
    %c0_80 = arith.constant 0 : index
    %c0_81 = arith.constant 0 : index
    %87 = vector.load %arg4[%86, %c0_80, %c0_81] : memref<96x1x128xf32, #tpu.memory_space<vmem>>, vector<1x1x128xf32>
    %88 = vector.shape_cast %87 : vector<1x1x128xf32> to vector<1x128xf32>
    %c5_82 = arith.constant 5 : index
    %c0_83 = arith.constant 0 : index
    %89 = vector.load %arg7[%c5_82, %c0_83] : memref<8x128xf32, #tpu.memory_space<vmem>>, vector<1x128xf32>
    tpu.vector_store %arg7[%c5_82, %c0_83], %88 {strides = array<i32>} : memref<8x128xf32, #tpu.memory_space<vmem>>, vector<1x128xf32>,
    %c6 = arith.constant 6 : index
    %90 = memref.load %arg0[%c6] : memref<8xi32, #tpu.memory_space<smem>>
    %91 = arith.index_cast %90 : i32 to index
    %c0_84 = arith.constant 0 : index
    %c0_85 = arith.constant 0 : index
    %92 = vector.load %arg3[%91, %c0_84, %c0_85] : memref<64x1x128xf32, #tpu.memory_space<vmem>>, vector<1x1x128xf32>
    %93 = vector.shape_cast %92 : vector<1x1x128xf32> to vector<1x128xf32>
    %c6_86 = arith.constant 6 : index
    %c0_87 = arith.constant 0 : index
    %94 = vector.load %arg5[%c6_86, %c0_87] : memref<8x128xf32, #tpu.memory_space<vmem>>, vector<1x128xf32>
    tpu.vector_store %arg5[%c6_86, %c0_87], %93 {strides = array<i32>} : memref<8x128xf32, #tpu.memory_space<vmem>>, vector<1x128xf32>,
    %c6_88 = arith.constant 6 : index
    %95 = memref.load %arg1[%c6_88] : memref<8xi32, #tpu.memory_space<smem>>
    %96 = arith.index_cast %95 : i32 to index
    %c0_89 = arith.constant 0 : index
    %c0_90 = arith.constant 0 : index
    %97 = vector.load %arg4[%96, %c0_89, %c0_90] : memref<96x1x128xf32, #tpu.memory_space<vmem>>, vector<1x1x128xf32>
    %98 = vector.shape_cast %97 : vector<1x1x128xf32> to vector<1x128xf32>
    %c6_91 = arith.constant 6 : index
    %c0_92 = arith.constant 0 : index
    %99 = vector.load %arg6[%c6_91, %c0_92] : memref<8x128xf32, #tpu.memory_space<vmem>>, vector<1x128xf32>
    tpu.vector_store %arg6[%c6_91, %c0_92], %98 {strides = array<i32>} : memref<8x128xf32, #tpu.memory_space<vmem>>, vector<1x128xf32>,
    %c6_93 = arith.constant 6 : index
    %100 = memref.load %arg2[%c6_93] : memref<8xi32, #tpu.memory_space<smem>>
    %101 = arith.index_cast %100 : i32 to index
    %c0_94 = arith.constant 0 : index
    %c0_95 = arith.constant 0 : index
    %102 = vector.load %arg4[%101, %c0_94, %c0_95] : memref<96x1x128xf32, #tpu.memory_space<vmem>>, vector<1x1x128xf32>
    %103 = vector.shape_cast %102 : vector<1x1x128xf32> to vector<1x128xf32>
    %c6_96 = arith.constant 6 : index
    %c0_97 = arith.constant 0 : index
    %104 = vector.load %arg7[%c6_96, %c0_97] : memref<8x128xf32, #tpu.memory_space<vmem>>, vector<1x128xf32>
    tpu.vector_store %arg7[%c6_96, %c0_97], %103 {strides = array<i32>} : memref<8x128xf32, #tpu.memory_space<vmem>>, vector<1x128xf32>,
    %c7 = arith.constant 7 : index
    %105 = memref.load %arg0[%c7] : memref<8xi32, #tpu.memory_space<smem>>
    %106 = arith.index_cast %105 : i32 to index
    %c0_98 = arith.constant 0 : index
    %c0_99 = arith.constant 0 : index
    %107 = vector.load %arg3[%106, %c0_98, %c0_99] : memref<64x1x128xf32, #tpu.memory_space<vmem>>, vector<1x1x128xf32>
    %108 = vector.shape_cast %107 : vector<1x1x128xf32> to vector<1x128xf32>
    %c7_100 = arith.constant 7 : index
    %c0_101 = arith.constant 0 : index
    %109 = vector.load %arg5[%c7_100, %c0_101] : memref<8x128xf32, #tpu.memory_space<vmem>>, vector<1x128xf32>
    tpu.vector_store %arg5[%c7_100, %c0_101], %108 {strides = array<i32>} : memref<8x128xf32, #tpu.memory_space<vmem>>, vector<1x128xf32>,
    %c7_102 = arith.constant 7 : index
    %110 = memref.load %arg1[%c7_102] : memref<8xi32, #tpu.memory_space<smem>>
    %111 = arith.index_cast %110 : i32 to index
    %c0_103 = arith.constant 0 : index
    %c0_104 = arith.constant 0 : index
    %112 = vector.load %arg4[%111, %c0_103, %c0_104] : memref<96x1x128xf32, #tpu.memory_space<vmem>>, vector<1x1x128xf32>
    %113 = vector.shape_cast %112 : vector<1x1x128xf32> to vector<1x128xf32>
    %c7_105 = arith.constant 7 : index
    %c0_106 = arith.constant 0 : index
    %114 = vector.load %arg6[%c7_105, %c0_106] : memref<8x128xf32, #tpu.memory_space<vmem>>, vector<1x128xf32>
    tpu.vector_store %arg6[%c7_105, %c0_106], %113 {strides = array<i32>} : memref<8x128xf32, #tpu.memory_space<vmem>>, vector<1x128xf32>,
    %c7_107 = arith.constant 7 : index
    %115 = memref.load %arg2[%c7_107] : memref<8xi32, #tpu.memory_space<smem>>
    %116 = arith.index_cast %115 : i32 to index
    %c0_108 = arith.constant 0 : index
    %c0_109 = arith.constant 0 : index
    %117 = vector.load %arg4[%116, %c0_108, %c0_109] : memref<96x1x128xf32, #tpu.memory_space<vmem>>, vector<1x1x128xf32>
    %118 = vector.shape_cast %117 : vector<1x1x128xf32> to vector<1x128xf32>
    %c7_110 = arith.constant 7 : index
    %c0_111 = arith.constant 0 : index
    %119 = vector.load %arg7[%c7_110, %c0_111] : memref<8x128xf32, #tpu.memory_space<vmem>>, vector<1x128xf32>
    tpu.vector_store %arg7[%c7_110, %c0_111], %118 {strides = array<i32>} : memref<8x128xf32, #tpu.memory_space<vmem>>, vector<1x128xf32>,
    return
  }
}

</mosaic_0001>

<llo_original>
// kernel: tpu_custom_call.1
$region0: #{tpu_custom_call.1}
  #allocation0 [shape = 'u32[]', space=smem, size = 0x4, offset = 0x4, fixed_abs, tag = 'smem constant byte address 0x4 - core index']
  #allocation1 [shape = 'u32[144,128]{1,0:T(1,128)}', space=vmem, size = 0x12000, scoped, tag = 'internal scratch']
  %s0 = inlined_call_operand.hbm [shape: s32[8], index: 0, kind: input, shape index: {}]
  %s1 = inlined_call_operand.vmem [shape: s32[8], index: 1, kind: input, shape index: {}]
  %s2 = inlined_call_operand.vmem [shape: s32[8], index: 2, kind: input, shape index: {}]
  %s3 = inlined_call_operand.hbm [shape: f32[64,1,128], index: 3, kind: input, shape index: {}]
  %s4 = inlined_call_operand.hbm [shape: f32[96,1,128], index: 4, kind: input, shape index: {}]
  %s5 = inlined_call_operand.hbm [shape: f32[8,128], index: 5, kind: output, shape index: {0}]
  %s6 = inlined_call_operand.hbm [shape: f32[8,128], index: 6, kind: output, shape index: {1}]
  %s7 = inlined_call_operand.hbm [shape: f32[8,128], index: 7, kind: output, shape index: {2}]
  %8 = xla_tuple %s5, %s6, %s7
  %s9 = sld [smem:[#allocation0]]
  $region66: #{tpu_custom_call.1} parent=0
    _
  %s11 = ssub.s32 1, %s9
  %s12 = scalar_select 0, %s11, %s9
  $region1: #{tpu_custom_call.1} parent=0
    #allocation2 [shape = 'u8[512]{0}', space=smem, size = 0x200, scoped, tag = 'input window, operand 0, single buffered']
    #allocation3 [shape = 's32[1]{0}', space=sflag, size = 0x4, scoped, tag = 'scoped memory for tpu_custom_call.1']
    #allocation4 [shape = 's32[1]{0}', space=sflag, size = 0x4, scoped, tag = 'scoped memory for tpu_custom_call.1']
    #allocation5 [shape = 's32[1]{0}', space=sflag, size = 0x4, scoped, tag = 'scoped memory for tpu_custom_call.1']
    #allocation6 [shape = 's32[1]{0}', space=sflag, size = 0x4, scoped, tag = 'scoped memory for tpu_custom_call.1']
    #allocation7 [shape = 'u8[512]{0}', space=smem, size = 0x200, scoped, tag = 'input window, operand 1, single buffered']
    #allocation8 [shape = 'u8[512]{0}', space=smem, size = 0x200, scoped, tag = 'input window, operand 2, single buffered']
    #allocation9 [shape = 's32[1]{0}', space=sflag, size = 0x4, scoped, tag = 'scoped memory for tpu_custom_call.1']
    #allocation10 [shape = 'u8[32768]{0}', space=vmem, size = 0x8000, scoped, tag = 'input window, operand 3, single buffered']
    #allocation11 [shape = 'u8[49152]{0}', space=vmem, size = 0xc000, scoped, tag = 'input window, operand 4, single buffered']
    #allocation12 [shape = 's32[1]{0}', space=sflag, size = 0x4, scoped, tag = 'scoped memory for tpu_custom_call.1']
    #allocation13 [shape = 'u8[4096]{0}', space=vmem, size = 0x1000, scoped, tag = 'output window, operand 0, single buffered']
    #allocation14 [shape = 'u8[4096]{0}', space=vmem, size = 0x1000, scoped, tag = 'output window, operand 1, single buffered']
    #allocation15 [shape = 's32[1]{0}', space=sflag, size = 0x4, scoped, tag = 'scoped memory for tpu_custom_call.1']
    #allocation16 [shape = 'u8[4096]{0}', space=vmem, size = 0x1000, scoped, tag = 'output window, operand 2, single buffered']
    %13 = vsyncpa [#allocation5], 0
    %14 = vsyncpa [#allocation6], 0
    %15 = vsyncpa [#allocation9], 0
    %16 = vsyncpa [#allocation3], 0
    %17 = vsyncpa [#allocation12], 0
    %18 = vsyncpa [#allocation4], 0
    %19 = vsyncpa [#allocation15], 0
    // Predicated region
    $region2: #{tpu_custom_call.1} parent=1 // pred_check
      _
    $region3: #{tpu_custom_call.1} parent=1 // pred_check_branch
      %21 = sbr.rel (0) target = $region5
    $region4: #{tpu_custom_call.1} parent=1 // pred_region
      %s23 = ssub.s32 16, 16
      %24 = vsyncadd [#allocation5], %s23
      %27 = dma.hbm_to_smem %s0, 16, [#allocation2], [#allocation5]
    $region5: #{tpu_custom_call.1} parent=1 // pred_fallthru
      _
    // Predicated region
    $region6: #{tpu_custom_call.1} parent=1 // pred_check
      _
    $region7: #{tpu_custom_call.1} parent=1 // pred_check_branch
      %29 = sbr.rel (0) target = $region9
    $region8: #{tpu_custom_call.1} parent=1 // pred_region
      %s31 = ssub.s32 16, 16
      %32 = vsyncadd [#allocation6], %s31
      %s34 = sshll.u32 %s1, 4
      %s35 = int_to_ptr.vmem [resolvable:$true] %s34
      %37 = dma.vmem_to_smem %s35, 16, [#allocation7], [#allocation6]
    $region9: #{tpu_custom_call.1} parent=1 // pred_fallthru
      _
    // Predicated region
    $region10: #{tpu_custom_call.1} parent=1 // pred_check
      _
    $region11: #{tpu_custom_call.1} parent=1 // pred_check_branch
      %39 = sbr.rel (0) target = $region13
    $region12: #{tpu_custom_call.1} parent=1 // pred_region
      %s41 = ssub.s32 16, 16
      %42 = vsyncadd [#allocation9], %s41
      %s44 = sshll.u32 %s2, 4
      %s45 = int_to_ptr.vmem [resolvable:$true] %s44
      %47 = dma.vmem_to_smem %s45, 16, [#allocation8], [#allocation9]
    $region13: #{tpu_custom_call.1} parent=1 // pred_fallthru
      _
    // Predicated region
    $region14: #{tpu_custom_call.1} parent=1 // pred_check
      _
    $region15: #{tpu_custom_call.1} parent=1 // pred_check_branch
      %49 = sbr.rel (0) target = $region17
    $region16: #{tpu_custom_call.1} parent=1 // pred_region
      %s51 = ssub.s32 1024, 1024
      %52 = vsyncadd [#allocation3], %s51
      %s53 = sshll.u32 [#allocation10], 4
      %s54 = int_to_ptr.vmem [resolvable:$true] %s53
      %59 = dma.hbm_to_vmem [thread:$0]  %s3, 1024, %s54, [#allocation3], 16, 16, 1
    $region17: #{tpu_custom_call.1} parent=1 // pred_fallthru
      _
    // Predicated region
    $region18: #{tpu_custom_call.1} parent=1 // pred_check
      _
    $region19: #{tpu_custom_call.1} parent=1 // pred_check_branch
      %61 = sbr.rel (0) target = $region21
    $region20: #{tpu_custom_call.1} parent=1 // pred_region
      %s63 = ssub.s32 1536, 1536
      %64 = vsyncadd [#allocation12], %s63
      %s65 = sshll.u32 [#allocation11], 4
      %s66 = int_to_ptr.vmem [resolvable:$true] %s65
      %71 = dma.hbm_to_vmem [thread:$0]  %s4, 1536, %s66, [#allocation12], 16, 16, 1
    $region21: #{tpu_custom_call.1} parent=1 // pred_fallthru
      _
    // Predicated region
    $region22: #{tpu_custom_call.1} parent=1 // pred_check
      _
    $region23: #{tpu_custom_call.1} parent=1 // pred_check_branch
      %73 = sbr.rel (0) target = $region25
    $region24: #{tpu_custom_call.1} parent=1 // pred_region
      %74 = dma.done [#allocation5], 16
    $region25: #{tpu_custom_call.1} parent=1 // pred_fallthru
      _
    // Predicated region
    $region26: #{tpu_custom_call.1} parent=1 // pred_check
      _
    $region27: #{tpu_custom_call.1} parent=1 // pred_check_branch
      %76 = sbr.rel (0) target = $region29
    $region28: #{tpu_custom_call.1} parent=1 // pred_region
      %77 = dma.done [#allocation6], 16
    $region29: #{tpu_custom_call.1} parent=1 // pred_fallthru
      _
    // Predicated region
    $region30: #{tpu_custom_call.1} parent=1 // pred_check
      _
    $region31: #{tpu_custom_call.1} parent=1 // pred_check_branch
      %79 = sbr.rel (0) target = $region33
    $region32: #{tpu_custom_call.1} parent=1 // pred_region
      %80 = dma.done [#allocation9], 16
    $region33: #{tpu_custom_call.1} parent=1 // pred_fallthru
      _
    // Predicated region
    $region34: #{tpu_custom_call.1} parent=1 // pred_check
      _
    $region35: #{tpu_custom_call.1} parent=1 // pred_check_branch
      %82 = sbr.rel (0) target = $region37
    $region36: #{tpu_custom_call.1} parent=1 // pred_region
      %83 = dma.done [#allocation3], 1024
    $region37: #{tpu_custom_call.1} parent=1 // pred_fallthru
      _
    // Predicated region
    $region38: #{tpu_custom_call.1} parent=1 // pred_check
      _
    $region39: #{tpu_custom_call.1} parent=1 // pred_check_branch
      %85 = sbr.rel (0) target = $region41
    $region40: #{tpu_custom_call.1} parent=1 // pred_region
      %86 = dma.done [#allocation12], 1536
    $region41: #{tpu_custom_call.1} parent=1 // pred_fallthru
      _
    %87 = sfence
    %s88 = sld [smem:[#allocation2]]
    %s89 = scalar_lea.vmem [#allocation10], %s88
    %v90 = vld [vmem:[%s89] sm:$0x1]
    %91 = vst [vmem:[#allocation13] sm:$0x1] %v90
    %s92 = sld [smem:[#allocation7]]
    %s93 = scalar_lea.vmem [#allocation11], %s92
    %v94 = vld [vmem:[%s93] sm:$0x1]
    %95 = vst [vmem:[#allocation14] sm:$0x1] %v94
    %s96 = sld [smem:[#allocation8]]
    %s97 = scalar_lea.vmem [#allocation11], %s96
    %v98 = vld [vmem:[%s97] sm:$0x1]
    %99 = vst [vmem:[#allocation16] sm:$0x1] %v98
    %s100 = sld [smem:[#allocation2 + $0x1]]
    %s101 = scalar_lea.vmem [#allocation10], %s100
    %v102 = vld [vmem:[%s101] sm:$0x1]
    %103 = vst [vmem:[#allocation13 + $0x1] sm:$0x1] %v102
    %s104 = sld [smem:[#allocation7 + $0x1]]
    %s105 = scalar_lea.vmem [#allocation11], %s104
    %v106 = vld [vmem:[%s105] sm:$0x1]
    %107 = vst [vmem:[#allocation14 + $0x1] sm:$0x1] %v106
    %s108 = sld [smem:[#allocation8 + $0x1]]
    %s109 = scalar_lea.vmem [#allocation11], %s108
    %v110 = vld [vmem:[%s109] sm:$0x1]
    %111 = vst [vmem:[#allocation16 + $0x1] sm:$0x1] %v110
    %s112 = sld [smem:[#allocation2 + $0x2]]
    %s113 = scalar_lea.vmem [#allocation10], %s112
    %v114 = vld [vmem:[%s113] sm:$0x1]
    %115 = vst [vmem:[#allocation13 + $0x2] sm:$0x1] %v114
    %s116 = sld [smem:[#allocation7 + $0x2]]
    %s117 = scalar_lea.vmem [#allocation11], %s116
    %v118 = vld [vmem:[%s117] sm:$0x1]
    %119 = vst [vmem:[#allocation14 + $0x2] sm:$0x1] %v118
    %s120 = sld [smem:[#allocation8 + $0x2]]
    %s121 = scalar_lea.vmem [#allocation11], %s120
    %v122 = vld [vmem:[%s121] sm:$0x1]
    %123 = vst [vmem:[#allocation16 + $0x2] sm:$0x1] %v122
    %s124 = sld [smem:[#allocation2 + $0x3]]
    %s125 = scalar_lea.vmem [#allocation10], %s124
    %v126 = vld [vmem:[%s125] sm:$0x1]
    %127 = vst [vmem:[#allocation13 + $0x3] sm:$0x1] %v126
    %s128 = sld [smem:[#allocation7 + $0x3]]
    %s129 = scalar_lea.vmem [#allocation11], %s128
    %v130 = vld [vmem:[%s129] sm:$0x1]
    %131 = vst [vmem:[#allocation14 + $0x3] sm:$0x1] %v130
    %s132 = sld [smem:[#allocation8 + $0x3]]
    %s133 = scalar_lea.vmem [#allocation11], %s132
    %v134 = vld [vmem:[%s133] sm:$0x1]
    %135 = vst [vmem:[#allocation16 + $0x3] sm:$0x1] %v134
    %s136 = sld [smem:[#allocation2 + $0x4]]
    %s137 = scalar_lea.vmem [#allocation10], %s136
    %v138 = vld [vmem:[%s137] sm:$0x1]
    %139 = vst [vmem:[#allocation13 + $0x4] sm:$0x1] %v138
    %s140 = sld [smem:[#allocation7 + $0x4]]
    %s141 = scalar_lea.vmem [#allocation11], %s140
    %v142 = vld [vmem:[%s141] sm:$0x1]
    %143 = vst [vmem:[#allocation14 + $0x4] sm:$0x1] %v142
    %s144 = sld [smem:[#allocation8 + $0x4]]
    %s145 = scalar_lea.vmem [#allocation11], %s144
    %v146 = vld [vmem:[%s145] sm:$0x1]
    %147 = vst [vmem:[#allocation16 + $0x4] sm:$0x1] %v146
    %s148 = sld [smem:[#allocation2 + $0x5]]
    %s149 = scalar_lea.vmem [#allocation10], %s148
    %v150 = vld [vmem:[%s149] sm:$0x1]
    %151 = vst [vmem:[#allocation13 + $0x5] sm:$0x1] %v150
    %s152 = sld [smem:[#allocation7 + $0x5]]
    %s153 = scalar_lea.vmem [#allocation11], %s152
    %v154 = vld [vmem:[%s153] sm:$0x1]
    %155 = vst [vmem:[#allocation14 + $0x5] sm:$0x1] %v154
    %s156 = sld [smem:[#allocation8 + $0x5]]
    %s157 = scalar_lea.vmem [#allocation11], %s156
    %v158 = vld [vmem:[%s157] sm:$0x1]
    %159 = vst [vmem:[#allocation16 + $0x5] sm:$0x1] %v158
    %s160 = sld [smem:[#allocation2 + $0x6]]
    %s161 = scalar_lea.vmem [#allocation10], %s160
    %v162 = vld [vmem:[%s161] sm:$0x1]
    %163 = vst [vmem:[#allocation13 + $0x6] sm:$0x1] %v162
    %s164 = sld [smem:[#allocation7 + $0x6]]
    %s165 = scalar_lea.vmem [#allocation11], %s164
    %v166 = vld [vmem:[%s165] sm:$0x1]
    %167 = vst [vmem:[#allocation14 + $0x6] sm:$0x1] %v166
    %s168 = sld [smem:[#allocation8 + $0x6]]
    %s169 = scalar_lea.vmem [#allocation11], %s168
    %v170 = vld [vmem:[%s169] sm:$0x1]
    %171 = vst [vmem:[#allocation16 + $0x6] sm:$0x1] %v170
    %s172 = sld [smem:[#allocation2 + $0x7]]
    %s173 = scalar_lea.vmem [#allocation10], %s172
    %v174 = vld [vmem:[%s173] sm:$0x1]
    %175 = vst [vmem:[#allocation13 + $0x7] sm:$0x1] %v174
    %s176 = sld [smem:[#allocation7 + $0x7]]
    %s177 = scalar_lea.vmem [#allocation11], %s176
    %v178 = vld [vmem:[%s177] sm:$0x1]
    %179 = vst [vmem:[#allocation14 + $0x7] sm:$0x1] %v178
    %s180 = sld [smem:[#allocation8 + $0x7]]
    %s181 = scalar_lea.vmem [#allocation11], %s180
    %v182 = vld [vmem:[%s181] sm:$0x1]
    %183 = vst [vmem:[#allocation16 + $0x7] sm:$0x1] %v182
    // Predicated region
    $region42: #{tpu_custom_call.1} parent=1 // pred_check
      _
    $region43: #{tpu_custom_call.1} parent=1 // pred_check_branch
      %185 = sbr.rel (0) target = $region45
    $region44: #{tpu_custom_call.1} parent=1 // pred_region
      %s187 = ssub.s32 128, 128
      %188 = vsyncadd [#allocation4], %s187
      %s190 = sshll.u32 [#allocation13], 4
      %s191 = int_to_ptr.vmem [resolvable:$true] %s190
      %193 = dma.vmem_to_hbm [thread:$0]  %s191, 128, %s5, [#allocation4]
    $region45: #{tpu_custom_call.1} parent=1 // pred_fallthru
      _
    // Predicated region
    $region46: #{tpu_custom_call.1} parent=1 // pred_check
      _
    $region47: #{tpu_custom_call.1} parent=1 // pred_check_branch
      %195 = sbr.rel (0) target = $region49
    $region48: #{tpu_custom_call.1} parent=1 // pred_region
      %s197 = ssub.s32 128, 128
      %198 = vsyncadd [#allocation15], %s197
      %s200 = sshll.u32 [#allocation14], 4
      %s201 = int_to_ptr.vmem [resolvable:$true] %s200
      %203 = dma.vmem_to_hbm [thread:$0]  %s201, 128, %s6, [#allocation15]
    $region49: #{tpu_custom_call.1} parent=1 // pred_fallthru
      _
    // Predicated region
    $region50: #{tpu_custom_call.1} parent=1 // pred_check
      _
    $region51: #{tpu_custom_call.1} parent=1 // pred_check_branch
      %205 = sbr.rel (0) target = $region53
    $region52: #{tpu_custom_call.1} parent=1 // pred_region
      %s207 = ssub.s32 128, 128
      %208 = vsyncadd [#allocation15], %s207
      %s210 = sshll.u32 [#allocation16], 4
      %s211 = int_to_ptr.vmem [resolvable:$true] %s210
      %213 = dma.vmem_to_hbm [thread:$0]  %s211, 128, %s7, [#allocation15]
    $region53: #{tpu_custom_call.1} parent=1 // pred_fallthru
      _
    // Predicated region
    $region54: #{tpu_custom_call.1} parent=1 // pred_check
      _
    $region55: #{tpu_custom_call.1} parent=1 // pred_check_branch
      %215 = sbr.rel (0) target = $region57
    $region56: #{tpu_custom_call.1} parent=1 // pred_region
      %216 = dma.done [#allocation4], 128
    $region57: #{tpu_custom_call.1} parent=1 // pred_fallthru
      _
    // Predicated region
    $region58: #{tpu_custom_call.1} parent=1 // pred_check
      _
    $region59: #{tpu_custom_call.1} parent=1 // pred_check_branch
      %218 = sbr.rel (0) target = $region61
    $region60: #{tpu_custom_call.1} parent=1 // pred_region
      %219 = dma.done [#allocation15], 128
    $region61: #{tpu_custom_call.1} parent=1 // pred_fallthru
      _
    // Predicated region
    $region62: #{tpu_custom_call.1} parent=1 // pred_check
      _
    $region63: #{tpu_custom_call.1} parent=1 // pred_check_branch
      %221 = sbr.rel (0) target = $region65
    $region64: #{tpu_custom_call.1} parent=1 // pred_region
      %222 = dma.done [#allocation15], 128
    $region65: #{tpu_custom_call.1} parent=1 // pred_fallthru
      _
    %223 = vsyncpa [#allocation3], 1
    %224 = vsyncpa [#allocation12], 1
    %225 = vsyncpa [#allocation4], 1
    %226 = vsyncpa [#allocation15], 1
    %227 = vsyncpa [#allocation5], 1
    %228 = vsyncpa [#allocation6], 1
    %229 = vsyncpa [#allocation9], 1

</llo_original>
